<compile_context>
chip_gen: v6e
topology: v6e:2x2x1
jax: 0.10.0
libtpu: 0.0.40
codegen_flags: <defaults>
</compile_context>

<pallas_src>
import math

import jax
import jax.numpy as jnp
from jax.experimental import pallas as pl
from jax.experimental.pallas import tpu as pltpu

# ---------------- configs (small, consistent with the module) ----------------
SEG_LEN = 8          # configs.seg_len == n_fft == inner-model window
HOP_LEN = 4          # configs.hop_len
SEQ_LEN = 32         # configs.seq_len (encoder series length)
PRED_LEN = 16        # configs.pred_len (forecast series length)
PAD = False          # configs.pad
MODEL_NAME = "Linear"

assert (SEQ_LEN - SEG_LEN) % HOP_LEN == 0
assert (PRED_LEN - SEG_LEN) % HOP_LEN == 0

N_FFT = SEG_LEN
N_FREQ = N_FFT // 2 + 1                               # onesided spectrum size
T_ENC = 1 + (SEQ_LEN - SEG_LEN) // HOP_LEN            # encoder STFT frames
P_FRAMES = 1 + (PRED_LEN - SEG_LEN) // HOP_LEN        # predicted STFT frames
L_OUT = N_FFT + HOP_LEN * (P_FRAMES - 1)              # istft output length
assert L_OUT == PRED_LEN                              # pad=False path

LANE = 128                                            # TPU lane width
TB_MAX = 4096                                         # batch-tile cap (lanes)


# -------------------------- constant basis matrices --------------------------
def _build_basis():
    n = jnp.arange(N_FFT, dtype=jnp.float32)[:, None]
    f = jnp.arange(N_FREQ, dtype=jnp.float32)[None, :]
    ang = 2.0 * jnp.pi * n * f / N_FFT
    scale = 1.0 / math.sqrt(N_FFT)                    # normalized=True
    cos_fwd = jnp.cos(ang) * scale                    # (N, F): Re{STFT}
    sin_fwd = -jnp.sin(ang) * scale                   # (N, F): Im{STFT}
    # inverse (onesided irfft * sqrt(N)): weight 2 for interior bins
    wts = jnp.where(
        (jnp.arange(N_FREQ) == 0) | (jnp.arange(N_FREQ) == N_FFT // 2), 1.0, 2.0
    ).astype(jnp.float32)
    dc = (wts[:, None] * jnp.cos(ang).T) * scale      # (F, N)
    ds = (-wts[:, None] * jnp.sin(ang).T) * scale     # (F, N)
    return cos_fwd, sin_fwd, dc, ds


def _build_ola():
    # Overlap-add placement tensor and inverse window envelope (window = ones).
    p = jnp.arange(P_FRAMES)[:, None, None]
    n = jnp.arange(N_FFT)[None, :, None]
    m = jnp.arange(L_OUT)[None, None, :]
    ola = (m == p * HOP_LEN + n).astype(jnp.float32)  # (P, N, L)
    env = jnp.sum(ola, axis=(0, 1))                   # (L,)  window^2 OLA
    inv_env = (1.0 / env)[None, :]                    # (1, L)
    return ola, inv_env


# ------------------- literal (PyTorch-path) reference chain -------------------
def frame_signal(x, seg, hop):
    # x: (B, L)  ->  frames (B, T, seg), center=False framing
    n_frames = 1 + (x.shape[1] - seg) // hop
    idx = jnp.arange(n_frames)[:, None] * hop + jnp.arange(seg)[None, :]
    return x[:, idx]


def affine_chain(x_flat, W, bias, cos_fwd, sin_fwd, dc, ds, ola, inv_env):
    """Pure-JAX reference that follows the PyTorch forward literally."""
    frames = frame_signal(x_flat, SEG_LEN, HOP_LEN)                  # (B,T,N)
    spec_r = frames @ cos_fwd                                        # (B,T,F)
    spec_i = frames @ sin_fwd                                        # (B,T,F)
    enc = jnp.concatenate([spec_r, spec_i], axis=-1)                 # (B,T,2F)
    out = jnp.einsum('pt,btc->bpc', W, enc) + bias[None, :, None]    # (B,P,2F)
    out_r, out_i = out[..., :N_FREQ], out[..., N_FREQ:]
    rec = (jnp.einsum('bpf,fn->bpn', out_r, dc)
           + jnp.einsum('bpf,fn->bpn', out_i, ds))                   # (B,P,N)
    y = jnp.einsum('bpn,pnl->bl', rec, ola) * inv_env                # (B,L)
    return y


def build_fused_affine(W, bias, cos_fwd, sin_fwd, dc, ds, ola, inv_env):
    """Precompose the whole chain into y = x @ A + c (exact: chain is affine)."""
    chain = lambda x: affine_chain(x, W, bias, cos_fwd, sin_fwd, dc, ds, ola, inv_env)
    zero = jnp.zeros((1, SEQ_LEN), jnp.float32)
    c = chain(zero)[0]                                               # (L,)  bias path
    eye = jnp.eye(SEQ_LEN, dtype=jnp.float32)
    A = chain(eye) - c[None, :]                                      # (SEQ_LEN, L)
    return A, c


# --------------------------------- kernel ------------------------------------
def _fused_affine_kernel(a_ref, c_ref, x_ref, out_ref):
    # out_T tile (L_OUT, TB) = A_T (L_OUT, SEQ_LEN) @ x_T tile (SEQ_LEN, TB) + c.
    # x streams in bf16; accumulate and store in f32. Batch is the lane axis,
    # so the store is a full-width (unmasked) vst.
    x = x_ref[...].astype(jnp.float32)
    out_ref[...] = (
        jnp.dot(a_ref[...], x, preferred_element_type=jnp.float32) + c_ref[...]
    )


def fused_forward(x_flat, A, c, *, stream_dtype=jnp.bfloat16):
    """y (B, L_OUT) = x_flat (B, SEQ_LEN) @ A + c, via a batch-tiled,
    lane-dense (transposed) Pallas matmul."""
    B = x_flat.shape[0]

    # Lane-dense padding of the batch axis and batch-tile selection.
    b_lane = max(LANE, ((B + LANE - 1) // LANE) * LANE)
    tb = min(TB_MAX, b_lane)                 # multiple of 128 in both branches
    b_pad = ((b_lane + tb - 1) // tb) * tb
    n_tiles = b_pad // tb

    # Layout plumbing in the wrapper (not in-kernel): transpose + pad + cast.
    x_t = jnp.pad(x_flat.T.astype(stream_dtype), ((0, 0), (0, b_pad - B)))
    a_t = A.T.astype(jnp.float32)            # (L_OUT, SEQ_LEN), tiny, resident
    c_col = c.reshape(L_OUT, 1).astype(jnp.float32)

    x_bytes = jnp.dtype(stream_dtype).itemsize
    bytes_accessed = (4 * (L_OUT * SEQ_LEN + L_OUT)      # resident A, c
                      + x_bytes * SEQ_LEN * b_pad        # streamed x
                      + 4 * L_OUT * b_pad)               # streamed out

    out_t = pl.pallas_call(
        _fused_affine_kernel,
        out_shape=jax.ShapeDtypeStruct((L_OUT, b_pad), jnp.float32),
        grid=(n_tiles,),
        in_specs=[
            pl.BlockSpec((L_OUT, SEQ_LEN), lambda i: (0, 0)),   # A_T, resident
            pl.BlockSpec((L_OUT, 1), lambda i: (0, 0)),         # c,   resident
            pl.BlockSpec((SEQ_LEN, tb), lambda i: (0, i)),      # x_T batch tile
        ],
        out_specs=pl.BlockSpec((L_OUT, tb), lambda i: (0, i)),  # out_T batch tile
        compiler_params=pltpu.CompilerParams(
            dimension_semantics=("parallel",),                  # v7x: both TCs
        ),
        cost_estimate=pl.CostEstimate(
            flops=2 * b_pad * SEQ_LEN * L_OUT + b_pad * L_OUT,
            transcendentals=0,
            bytes_accessed=bytes_accessed,
        ),
    )(a_t, c_col, x_t)

    return out_t[:, :B].T                     # back to (B, L_OUT)


# ------------------------------ module forward -------------------------------
def stftformer_forward(params, x_enc, x_mark_enc, x_dec, x_mark_dec):
    A, c = params
    # Parity with the PyTorch forward: the 'Linear' branch of _run_model() only
    # consumes x_enc; STFT(x_dec) and the time-mark slices do not affect the
    # output, so the dead work is simply not emitted.
    del x_mark_enc, x_dec, x_mark_dec
    y = fused_forward(x_enc[..., 0], A, c)
    # pad=False: istft length already equals PRED_LEN; unsqueeze(-1)
    return y[..., None]


# ------------------------------------ main ------------------------------------
if __name__ == "__main__":
    B = 2
    TIME_FEAT = 4

    key = jax.random.PRNGKey(0)
    kW, kb, kx1, kx2, km1, km2, kx3 = jax.random.split(key, 7)

    # deterministic 'Linear' inner-model params (nn.Linear(T_ENC -> P_FRAMES))
    bound = 1.0 / math.sqrt(T_ENC)
    W = jax.random.uniform(kW, (P_FRAMES, T_ENC), jnp.float32, -bound, bound)
    bias = jax.random.uniform(kb, (P_FRAMES,), jnp.float32, -bound, bound)

    cos_fwd, sin_fwd, dc, ds = _build_basis()
    ola, inv_env = _build_ola()

    # Precompose the whole STFT -> Linear -> ISTFT -> OLA chain once.
    A, c = build_fused_affine(W, bias, cos_fwd, sin_fwd, dc, ds, ola, inv_env)
    params = (A, c)

    # module inputs (univariate series + time marks)
    x_enc = jax.random.normal(kx1, (B, SEQ_LEN, 1), jnp.float32)
    x_dec = jax.random.normal(kx2, (B, PRED_LEN, 1), jnp.float32)
    x_mark_enc = jax.random.normal(km1, (B, SEQ_LEN, TIME_FEAT), jnp.float32)
    x_mark_dec = jax.random.normal(km2, (B, PRED_LEN, TIME_FEAT), jnp.float32)

    out = stftformer_forward(params, x_enc, x_mark_enc, x_dec, x_mark_dec)
    out = jax.block_until_ready(out)
    assert out.shape == (B, PRED_LEN, 1), out.shape

    ref_args = (W, bias, cos_fwd, sin_fwd, dc, ds, ola, inv_env)

    # 1) Exact check of the kernel math (modulo the bf16 quantization of x):
    #    compare against the literal chain fed with bf16-rounded inputs.
    x_q = x_enc[..., 0].astype(jnp.bfloat16).astype(jnp.float32)
    ref_q = affine_chain(x_q, *ref_args)[..., None]
    err_q = float(jnp.max(jnp.abs(out - ref_q)))
    assert err_q < 1e-4, f"kernel math mismatch (bf16-quantized ref): {err_q}"

    # 2) End-to-end check against the exact f32 reference (bf16 streaming of
    #    x bounds the error; accumulation/bias/output are f32).
    ref = affine_chain(x_enc[..., 0], *ref_args)[..., None]
    err = float(jnp.max(jnp.abs(out - ref)))
    assert err < 3e-2, f"kernel/reference mismatch: max abs err = {err}"

    # 3) Larger-batch run exercising the multi-step (pipelined, lane-dense)
    #    grid: 9000 rows -> padded to 12288 -> 3 grid steps of TB=4096.
    B_big = 9000
    x_big = jax.random.normal(kx3, (B_big, SEQ_LEN), jnp.float32)
    out_big = jax.block_until_ready(fused_forward(x_big, A, c))
    assert out_big.shape == (B_big, L_OUT), out_big.shape
    ref_big = affine_chain(
        x_big.astype(jnp.bfloat16).astype(jnp.float32), *ref_args)
    err_big = float(jnp.max(jnp.abs(out_big - ref_big)))
    assert err_big < 1e-4, f"tiled kernel mismatch: max abs err = {err_big}"

    print("KERNEL_OK")
</pallas_src>

<mosaic_0001>
module attributes {stable_mosaic.version = 11 : i64} {
  func.func @_fused_affine_kernel(%arg0: i32, %arg1: memref<16x32xf32, #tpu.memory_space<vmem>>, %arg2: memref<16x1xf32, #tpu.memory_space<vmem>>, %arg3: memref<32x128xbf16, #tpu.memory_space<vmem>>, %arg4: memref<16x128xf32, #tpu.memory_space<vmem>>) attributes {dimension_semantics = [#tpu.dimension_semantics<parallel>], iteration_bounds = array<i64: 1>, scalar_prefetch = 0 : i64, scratch_operands = 0 : i64, tpu.core_type = #tpu.core_type<tc>, window_params = [{pipeline_mode = #tpu.pipeline_mode<synchronous>, transform_indices = @transform_0, window_bounds = array<i64: 16, 32>}, {pipeline_mode = #tpu.pipeline_mode<synchronous>, transform_indices = @transform_1, window_bounds = array<i64: 16, 1>}, {transform_indices = @transform_2, window_bounds = array<i64: 32, 128>}, {transform_indices = @transform_3, window_bounds = array<i64: 16, 128>}]} {
    %c0 = arith.constant 0 : index
    %c0_0 = arith.constant 0 : index
    %0 = vector.load %arg3[%c0, %c0_0] : memref<32x128xbf16, #tpu.memory_space<vmem>>, vector<32x128xbf16>
    %1 = arith.extf %0 : vector<32x128xbf16> to vector<32x128xf32>
    %c0_1 = arith.constant 0 : index
    %c0_2 = arith.constant 0 : index
    %2 = vector.load %arg1[%c0_1, %c0_2] : memref<16x32xf32, #tpu.memory_space<vmem>>, vector<16x32xf32>
    %cst = arith.constant dense<0.000000e+00> : vector<16x128xf32>
    %3 = tpu.matmul %2, %1, %cst {dimension_numbers = #tpu.dot_dimension_numbers<[1], [0], [0], [1], [0, 0, 1, 1], [], []>} : vector<16x32xf32>, vector<32x128xf32>, vector<16x128xf32> -> vector<16x128xf32>
    %c0_3 = arith.constant 0 : index
    %c0_4 = arith.constant 0 : index
    %4 = vector.load %arg2[%c0_3, %c0_4] : memref<16x1xf32, #tpu.memory_space<vmem>>, vector<16x1xf32>
    %5 = vector.broadcast %4 : vector<16x1xf32> to vector<16x128xf32>
    %6 = arith.addf %3, %5 : vector<16x128xf32>
    %c0_5 = arith.constant 0 : index
    %c0_6 = arith.constant 0 : index
    %7 = vector.load %arg4[%c0_5, %c0_6] : memref<16x128xf32, #tpu.memory_space<vmem>>, vector<16x128xf32>
    tpu.vector_store %arg4[%c0_5, %c0_6], %6 {strides = array<i32>} : memref<16x128xf32, #tpu.memory_space<vmem>>, vector<16x128xf32>,
    return
  }
  func.func @transform_0(%arg0: i32) -> (i32, i32) {
    %c0_i32 = arith.constant 0 : i32
    %c0_i32_0 = arith.constant 0 : i32
    %c0_i32_1 = arith.constant 0 : i32
    return %c0_i32, %c0_i32_0 : i32, i32
  }
  func.func @transform_1(%arg0: i32) -> (i32, i32) {
    %c0_i32 = arith.constant 0 : i32
    %c0_i32_0 = arith.constant 0 : i32
    %c0_i32_1 = arith.constant 0 : i32
    return %c0_i32, %c0_i32_0 : i32, i32
  }
  func.func @transform_2(%arg0: i32) -> (i32, i32) {
    %c0_i32 = arith.constant 0 : i32
    %c0_i32_0 = arith.constant 0 : i32
    return %c0_i32, %arg0 : i32, i32
  }
  func.func @transform_3(%arg0: i32) -> (i32, i32) {
    %c0_i32 = arith.constant 0 : i32
    %c0_i32_0 = arith.constant 0 : i32
    return %c0_i32, %arg0 : i32, i32
  }
}

</mosaic_0001>

<llo_original>
// kernel: tpu_custom_call.1
$region0: #{tpu_custom_call.1}
  #allocation0 [shape = 'u32[]', space=smem, size = 0x4, offset = 0x4, fixed_abs, tag = 'smem constant byte address 0x4 - core index']
  #allocation1 [shape = 'u32[144,128]{1,0:T(1,128)}', space=vmem, size = 0x12000, scoped, tag = 'internal scratch']
  %s0 = inlined_call_operand.vmem [shape: f32[16,32], index: 0, kind: input, shape index: {}]
  %s1 = inlined_call_operand.vmem [shape: f32[16,1], index: 1, kind: input, shape index: {}]
  %s2 = inlined_call_operand.hbm [shape: bf16[32,128], index: 2, kind: input, shape index: {}]
  %s3 = inlined_call_operand.hbm [shape: f32[16,128], index: 3, kind: output, shape index: {}]
  %s4 = sld [smem:[#allocation0]]
  $region26: #{tpu_custom_call.1} parent=0
    _
  %s6 = ssub.s32 1, %s4
  %s7 = scalar_select 0, %s6, %s4
  $region1: #{tpu_custom_call.1} parent=0
    #allocation2 [shape = 'u8[8192]{0}', space=vmem, size = 0x2000, scoped, tag = 'input window, operand 2, single buffered']
    #allocation3 [shape = 's32[1]{0}', space=sflag, size = 0x4, scoped, tag = 'scoped memory for tpu_custom_call.1']
    #allocation4 [shape = 's32[1]{0}', space=sflag, size = 0x4, scoped, tag = 'scoped memory for tpu_custom_call.1']
    #allocation5 [shape = 'u8[8192]{0}', space=vmem, size = 0x2000, scoped, tag = 'output window, operand 0, single buffered']
    %8 = vsyncpa [#allocation3], 0
    %9 = vsyncpa [#allocation4], 0
    // Predicated region
    $region2: #{tpu_custom_call.1} parent=1 // pred_check
      _
    $region3: #{tpu_custom_call.1} parent=1 // pred_check_branch
      %11 = sbr.rel (0) target = $region5
    $region4: #{tpu_custom_call.1} parent=1 // pred_region
      _
    $region5: #{tpu_custom_call.1} parent=1 // pred_fallthru
      _
    // Predicated region
    $region6: #{tpu_custom_call.1} parent=1 // pred_check
      _
    $region7: #{tpu_custom_call.1} parent=1 // pred_check_branch
      %13 = sbr.rel (0) target = $region9
    $region8: #{tpu_custom_call.1} parent=1 // pred_region
      _
    $region9: #{tpu_custom_call.1} parent=1 // pred_fallthru
      _
    // Predicated region
    $region10: #{tpu_custom_call.1} parent=1 // pred_check
      _
    $region11: #{tpu_custom_call.1} parent=1 // pred_check_branch
      %15 = sbr.rel (0) target = $region13
    $region12: #{tpu_custom_call.1} parent=1 // pred_region
      %s17 = ssub.s32 256, 256
      %18 = vsyncadd [#allocation3], %s17
      %s19 = sshll.u32 [#allocation2], 4
      %s20 = int_to_ptr.vmem [resolvable:$true] %s19
      %25 = dma.hbm_to_vmem [thread:$0]  %s2, 256, %s20, [#allocation3], 64, 64, 4
    $region13: #{tpu_custom_call.1} parent=1 // pred_fallthru
      _
    // Predicated region
    $region14: #{tpu_custom_call.1} parent=1 // pred_check
      _
    $region15: #{tpu_custom_call.1} parent=1 // pred_check_branch
      %27 = sbr.rel (0) target = $region17
    $region16: #{tpu_custom_call.1} parent=1 // pred_region
      %28 = dma.done [#allocation3], 256
    $region17: #{tpu_custom_call.1} parent=1 // pred_fallthru
      _
    %v29 = vld [vmem:[#allocation2] sm:$0xf]
    %v30 = vld [vmem:[#allocation2 + $0x4] sm:$0xf]
    %v31 = vld [vmem:[#allocation2 + $0x8] sm:$0xf]
    %v32 = vld [vmem:[#allocation2 + $0xc] sm:$0xf]
    %v33 = vunpack.c.l.bf16 %v29
    %v34 = vunpack.c.l.bf16 %v30
    %v35 = vunpack.c.l.bf16 %v31
    %v36 = vunpack.c.l.bf16 %v32
    %v37 = vld [vmem:[%s0] sm:$0xff]
    %v38 = vld [vmem:[%s0 + $0x8] sm:$0xff]
    %v39 = vld [vmem:[%s1] sm:$0xff]
    %v40 = vld [vmem:[%s1 + $0x8] sm:$0xff]
    %42 = vset.pattern.permute.xlu0 0
    %43 = vperm.xlu0 %42, %v39
    %v44 = vpop.permute.xlu0 %43
    %47 = vset.pattern.permute.xlu0 0
    %48 = vperm.xlu0 %47, %v40
    %v49 = vpop.permute.xlu0 %48
    %vm51 = vcmask 261120
    %v53 = vsel %vm51, %v37, 0
    %v56 = vsel %vm51, %v38, 0
    %58 = vmatprep.subr.mxu0 0.0
    %59 = vmatpush1.msra.mxu0 0.0
    %60 = vmatprep.subr.mxu0 0.0
    %61 = vmatpush1.msra.mxu0 0.0
    %62 = vmatprep.subr.mxu0 0.0
    %63 = vmatpush1.msra.mxu0 0.0
    %64 = vmatprep.subr.mxu0 0.0
    %65 = vmatpush1.msra.mxu0 0.0
    %66 = vmatprep.subr.mxu0 0.0
    %67 = vmatpush1.msra.mxu0 0.0
    %68 = vmatprep.subr.mxu0 0.0
    %69 = vmatpush1.msra.mxu0 0.0
    %70 = vmatprep.subr.mxu0 0.0
    %71 = vmatpush1.msra.mxu0 0.0
    %72 = vmatprep.subr.mxu0 0.0
    %73 = vmatpush1.msra.mxu0 0.0
    %74 = vmatprep.subr.mxu0 0.0
    %75 = vmatpush1.msra.mxu0 0.0
    %76 = vmatprep.subr.mxu0 0.0
    %77 = vmatpush1.msra.mxu0 0.0
    %78 = vmatprep.subr.mxu0 0.0
    %79 = vmatpush1.msra.mxu0 0.0
    %80 = vmatprep.subr.mxu0 0.0
    %81 = vmatpush1.msra.mxu0 0.0
    %82 = vmatprep.subr.mxu0 0.0
    %83 = vmatpush1.msra.mxu0 %v36
    %84 = vmatprep.subr.mxu0 0.0
    %85 = vmatpush1.msra.mxu0 %v35
    %86 = vmatprep.subr.mxu0 0.0
    %87 = vmatpush1.msra.mxu0 %v34
    %88 = vmatprep.subr.mxu0 0.0
    %89 = vmatpush1.msra.mxu0 %v33
    %90 = vmatprep.subr.mxu0 0.0
    %91 = vmatpush2.msra.mxu0 0.0
    %92 = vmatprep.subr.mxu0 0.0
    %93 = vmatpush2.msra.mxu0 0.0
    %94 = vmatprep.subr.mxu0 0.0
    %95 = vmatpush2.msra.mxu0 0.0
    %96 = vmatprep.subr.mxu0 0.0
    %97 = vmatpush2.msra.mxu0 0.0
    %98 = vmatprep.subr.mxu0 0.0
    %99 = vmatpush2.msra.mxu0 0.0
    %100 = vmatprep.subr.mxu0 0.0
    %101 = vmatpush2.msra.mxu0 0.0
    %102 = vmatprep.subr.mxu0 0.0
    %103 = vmatpush2.msra.mxu0 0.0
    %104 = vmatprep.subr.mxu0 0.0
    %105 = vmatpush2.msra.mxu0 0.0
    %106 = vmatprep.subr.mxu0 0.0
    %107 = vmatpush2.msra.mxu0 0.0
    %108 = vmatprep.subr.mxu0 0.0
    %109 = vmatpush2.msra.mxu0 0.0
    %110 = vmatprep.subr.mxu0 0.0
    %111 = vmatpush2.msra.mxu0 0.0
    %112 = vmatprep.subr.mxu0 0.0
    %113 = vmatpush2.msra.mxu0 0.0
    %114 = vmatprep.subr.mxu0 0.0
    %115 = vmatpush2.msra.mxu0 0.0
    %116 = vmatprep.subr.mxu0 0.0
    %117 = vmatpush2.msra.mxu0 0.0
    %118 = vmatprep.subr.mxu0 0.0
    %119 = vmatpush2.msra.mxu0 0.0
    %120 = vmatprep.subr.mxu0 0.0
    %121 = vmatpush2.msra.mxu0 0.0
    %122 = vmatprep.mubr.f32.mxu0 0.0
    %123 = vmatmul.mubr.f32.gmra.mxu0 %v53
    %v124 = vpop.f32.mrf.mxu0
    %v125 = vadd.f32 %v44, %v124
    %v126 = vpop.f32.mrf.mxu0
    %127 = vmatprep.mubr.f32.mxu0 0.0
    %128 = vmatmul.mubr.f32.gmra.mxu0 %v56
    %v129 = vpop.f32.mrf.mxu0
    %v130 = vadd.f32 %v49, %v129
    %v131 = vpop.f32.mrf.mxu0
    %132 = vdwg.mxu0
    %133 = vst [vmem:[#allocation5] sm:$0xff] %v125
    %134 = vst [vmem:[#allocation5 + $0x8] sm:$0xff] %v130
    // Predicated region
    $region18: #{tpu_custom_call.1} parent=1 // pred_check
      _
    $region19: #{tpu_custom_call.1} parent=1 // pred_check_branch
      %136 = sbr.rel (0) target = $region21
    $region20: #{tpu_custom_call.1} parent=1 // pred_region
      %s138 = ssub.s32 256, 256
      %139 = vsyncadd [#allocation4], %s138
      %s140 = sshll.u32 [#allocation5], 4
      %s141 = int_to_ptr.vmem [resolvable:$true] %s140
      %146 = dma.vmem_to_hbm [thread:$0]  %s141, 256, %s3, [#allocation4], 128, 128, 8
    $region21: #{tpu_custom_call.1} parent=1 // pred_fallthru
      _
    // Predicated region
    $region22: #{tpu_custom_call.1} parent=1 // pred_check
      _
    $region23: #{tpu_custom_call.1} parent=1 // pred_check_branch
      %148 = sbr.rel (0) target = $region25
    $region24: #{tpu_custom_call.1} parent=1 // pred_region
      %149 = dma.done [#allocation4], 256
    $region25: #{tpu_custom_call.1} parent=1 // pred_fallthru
      _
    %150 = vsyncpa [#allocation3], 1
    %151 = vsyncpa [#allocation4], 1

</llo_original>
